<compile_context>
chip_gen: v6e
topology: v6e:2x2x1
jax: 0.10.0
libtpu: 0.0.40
codegen_flags: <defaults>
</compile_context>

<pallas_src>
import math

import jax
import jax.numpy as jnp
from jax.experimental import pallas as pl
from jax.experimental.pallas import tpu as pltpu


# ----------------------------------------------------------------------------
# Kernels
# ----------------------------------------------------------------------------
def _mlp_kernel_fused_acc(x_ref, w_ref, o_ref):
    """One (tm, tn) output tile; accumulates over the K grid axis directly
    into the (f32) output block, which stays VMEM-resident across K."""

    @pl.when(pl.program_id(2) == 0)
    def _():
        o_ref[...] = jnp.zeros_like(o_ref)

    xt = x_ref[...]
    if xt.dtype != w_ref.dtype:          # e.g. f32 activations, bf16 weights
        xt = xt.astype(w_ref.dtype)
    o_ref[...] += jnp.dot(xt, w_ref[...], preferred_element_type=jnp.float32)


def _mlp_kernel_scratch_acc(x_ref, w_ref, o_ref, acc_ref):
    """Same, but with a separate f32 VMEM accumulator for non-f32 outputs."""

    @pl.when(pl.program_id(2) == 0)
    def _():
        acc_ref[...] = jnp.zeros_like(acc_ref)

    xt = x_ref[...]
    if xt.dtype != w_ref.dtype:
        xt = xt.astype(w_ref.dtype)
    acc_ref[...] += jnp.dot(xt, w_ref[...], preferred_element_type=jnp.float32)

    @pl.when(pl.program_id(2) == pl.num_programs(2) - 1)
    def _():
        o_ref[...] = acc_ref[...].astype(o_ref.dtype)


# ----------------------------------------------------------------------------
# Tiling plan / helpers
# ----------------------------------------------------------------------------
def _round_up(a: int, b: int) -> int:
    return -(-a // b) * b


def _plan_nk(in_size: int, out_size: int, tn_max: int, tk_max: int):
    """Pick (tk, Kp, tn, Np).  Avoid padding unless required by the 8/128 rule
    or by tiling a dim larger than its tile cap."""
    # K (contraction): full-array block when it fits in one tile (no x pad).
    if in_size <= tk_max:
        tk, kp = in_size, in_size
    else:
        tk = tk_max                          # multiple of 128
        kp = _round_up(in_size, tk)
    # N (output): pad to 128 only when out_size < 128 (lane-dense stores).
    if out_size < 128:
        tn, np_ = 128, 128
    elif out_size <= tn_max:
        tn, np_ = out_size, out_size         # full-array block, no padding
    else:
        tn = tn_max                          # multiple of 128
        np_ = _round_up(out_size, tn)
    return tk, kp, tn, np_


def _vmem_limit_bytes(tm, tn, tk, x_item, w_item, o_item) -> int:
    """Tile footprint (double-buffered inputs + output + f32 acc) + headroom,
    capped at ~75% of physical VMEM (re-derived per generation at trace time)."""
    need = 2 * (tm * tk * x_item + tk * tn * w_item) + 2 * tm * tn * o_item
    need += tm * tn * 4                      # possible f32 accumulator
    limit = max(need + (8 << 20), 32 << 20)  # headroom for internal scratch
    try:
        cap = int(pltpu.get_tpu_info().vmem_capacity_bytes) * 3 // 4
    except Exception:
        cap = 48 << 20                       # conservative (v7x 64 MiB/core)
    return int(min(limit, cap))


# ----------------------------------------------------------------------------
# Forward
# ----------------------------------------------------------------------------
def _mlp_forward(x, w_kn, *, in_size, out_size, tk, kp, tn, np_, tm_max,
                 out_dtype):
    lead = x.shape[:-1]
    assert x.shape[-1] == in_size
    m = math.prod(lead) if lead else 1
    x2d = x.reshape(m, in_size)

    # M tiling: full-array block when it fits (no padding).
    if m <= tm_max:
        tm, mp = m, m
    else:
        tm = tm_max                          # multiple of 8
        mp = _round_up(m, tm)

    # Pad x only when strictly necessary (extra HBM pass otherwise avoided).
    if (mp, kp) != (m, in_size):
        x2d = jnp.pad(x2d, ((0, mp - m), (0, kp - in_size)))

    m_tiles, n_tiles, k_tiles = mp // tm, np_ // tn, kp // tk

    # v7x megacore: keep at least one "parallel" axis with extent >= 2.
    if m_tiles == 1 and n_tiles == 1 and tn >= 256 and tn % 256 == 0:
        tn //= 2
        n_tiles = np_ // tn

    grid = (m_tiles, n_tiles, k_tiles)

    x_item = jnp.dtype(x2d.dtype).itemsize
    w_item = jnp.dtype(w_kn.dtype).itemsize
    o_item = jnp.dtype(out_dtype).itemsize
    cost = pl.CostEstimate(
        flops=2 * mp * np_ * kp,
        transcendentals=0,
        bytes_accessed=(mp * kp * x_item * n_tiles        # x re-streamed per N-tile
                        + kp * np_ * w_item * m_tiles     # w re-streamed per M-tile
                        + mp * np_ * o_item),
    )

    if jnp.dtype(out_dtype) == jnp.dtype(jnp.float32):
        kernel = _mlp_kernel_fused_acc
        scratch_shapes = []
    else:
        kernel = _mlp_kernel_scratch_acc
        scratch_shapes = [pltpu.VMEM((tm, tn), jnp.float32)]

    out_padded = pl.pallas_call(
        kernel,
        out_shape=jax.ShapeDtypeStruct((mp, np_), out_dtype),
        grid_spec=pltpu.PrefetchScalarGridSpec(
            num_scalar_prefetch=0,
            grid=grid,
            in_specs=[
                pl.BlockSpec((tm, tk), lambda i, j, k: (i, k)),   # x tile
                pl.BlockSpec((tk, tn), lambda i, j, k: (k, j)),   # w tile [K,N]
            ],
            out_specs=pl.BlockSpec((tm, tn), lambda i, j, k: (i, j)),
            scratch_shapes=scratch_shapes,
        ),
        compiler_params=pltpu.CompilerParams(
            dimension_semantics=("parallel", "parallel", "arbitrary"),
            vmem_limit_bytes=_vmem_limit_bytes(tm, tn, tk, x_item, w_item, o_item),
        ),
        cost_estimate=cost,
    )(x2d, w_kn)

    out2d = out_padded
    if (mp, np_) != (m, out_size):
        out2d = out2d[:m, :out_size]
    return out2d.reshape(*lead, out_size)


def make_simple_mlp(weight, *, tm_max=512, tn_max=512, tk_max=1024,
                    compute_dtype=None, out_dtype=None, jit=True):
    """Prepare the SimpleMLP weight once (pad / cast / transpose to [K, N])
    and return a forward(x) closure.  `weight` is in PyTorch nn.Linear layout
    [output_size, input_size]; forward computes x @ weight.T."""
    assert tm_max % 8 == 0 and tn_max % 128 == 0 and tk_max % 128 == 0
    out_size, in_size = weight.shape
    tk, kp, tn, np_ = _plan_nk(in_size, out_size, tn_max, tk_max)

    w = weight if compute_dtype is None else weight.astype(compute_dtype)
    if (np_, kp) != (out_size, in_size):
        w = jnp.pad(w, ((0, np_ - out_size), (0, kp - in_size)))
    w_kn = jnp.transpose(w)                  # [Kp, Np] — canonical MXU RHS

    def forward(x):
        od = x.dtype if out_dtype is None else out_dtype
        return _mlp_forward(x, w_kn, in_size=in_size, out_size=out_size,
                            tk=tk, kp=kp, tn=tn, np_=np_, tm_max=tm_max,
                            out_dtype=od)

    return jax.jit(forward) if jit else forward


def simple_mlp(x, weight, **kwargs):
    """One-shot convenience wrapper (preps the weight per call; prefer
    make_simple_mlp for repeated forward passes)."""
    return make_simple_mlp(weight, jit=False, **kwargs)(x)


# ----------------------------------------------------------------------------
# Self-test
# ----------------------------------------------------------------------------
if __name__ == "__main__":
    key = jax.random.PRNGKey(0)
    kx, kw = jax.random.split(key)

    batch, seq, input_size, output_size = 2, 8, 32, 64

    x = jax.random.normal(kx, (batch, seq, input_size), dtype=jnp.float32)
    weight = (
        jax.random.normal(kw, (output_size, input_size), dtype=jnp.float32)
        * (1.0 / jnp.sqrt(float(input_size)))
    )

    ref = jnp.einsum("bsk,nk->bsn", x, weight)

    # f32 MXU path (exact module semantics).
    mlp_f32 = make_simple_mlp(weight)
    out = jax.block_until_ready(mlp_f32(x))
    assert out.shape == (batch, seq, output_size)
    assert jnp.allclose(out, ref, atol=1e-4, rtol=1e-4)

    # Optional fast path: bf16 MXU operands, f32 accumulation.
    mlp_bf16 = make_simple_mlp(weight, compute_dtype=jnp.bfloat16)
    out_bf16 = jax.block_until_ready(mlp_bf16(x))
    assert out_bf16.shape == (batch, seq, output_size)
    assert jnp.allclose(out_bf16, ref, atol=5e-2, rtol=5e-2)

    print("KERNEL_OK")
</pallas_src>

<mosaic_0001>
module attributes {stable_mosaic.version = 11 : i64} {
  func.func @_mlp_kernel_fused_acc(%arg0: i32, %arg1: i32, %arg2: i32, %arg3: memref<16x32xf32, #tpu.memory_space<vmem>>, %arg4: memref<32x128xf32, #tpu.memory_space<vmem>>, %arg5: memref<16x128xf32, #tpu.memory_space<vmem>>) attributes {dimension_semantics = [#tpu.dimension_semantics<parallel>, #tpu.dimension_semantics<parallel>, #tpu.dimension_semantics<arbitrary>], iteration_bounds = array<i64: 1, 1, 1>, scalar_prefetch = 0 : i64, scratch_operands = 0 : i64, tpu.core_type = #tpu.core_type<tc>, window_params = [{transform_indices = @transform_0, window_bounds = array<i64: 16, 32>}, {transform_indices = @transform_1, window_bounds = array<i64: 32, 128>}, {transform_indices = @transform_2, window_bounds = array<i64: 16, 128>}]} {
    %c0_i32 = arith.constant 0 : i32
    %0 = arith.cmpi eq, %arg2, %c0_i32 : i32
    %1 = arith.extui %0 : i1 to i32
    %c0_i32_0 = arith.constant 0 : i32
    %2 = arith.cmpi ne, %1, %c0_i32_0 : i32
    scf.if %2 {
      %cst_8 = arith.constant 0.000000e+00 : f32
      %9 = vector.broadcast %cst_8 : f32 to vector<16x128xf32>
      %c0_9 = arith.constant 0 : index
      %c0_10 = arith.constant 0 : index
      %10 = vector.load %arg5[%c0_9, %c0_10] : memref<16x128xf32, #tpu.memory_space<vmem>>, vector<16x128xf32>
      tpu.vector_store %arg5[%c0_9, %c0_10], %9 {strides = array<i32>} : memref<16x128xf32, #tpu.memory_space<vmem>>, vector<16x128xf32>,
    } else {
    }
    %c0 = arith.constant 0 : index
    %c0_1 = arith.constant 0 : index
    %3 = vector.load %arg3[%c0, %c0_1] : memref<16x32xf32, #tpu.memory_space<vmem>>, vector<16x32xf32>
    %c0_2 = arith.constant 0 : index
    %c0_3 = arith.constant 0 : index
    %4 = vector.load %arg5[%c0_2, %c0_3] : memref<16x128xf32, #tpu.memory_space<vmem>>, vector<16x128xf32>
    %c0_4 = arith.constant 0 : index
    %c0_5 = arith.constant 0 : index
    %5 = vector.load %arg4[%c0_4, %c0_5] : memref<32x128xf32, #tpu.memory_space<vmem>>, vector<32x128xf32>
    %cst = arith.constant dense<0.000000e+00> : vector<16x128xf32>
    %6 = tpu.matmul %3, %5, %cst {dimension_numbers = #tpu.dot_dimension_numbers<[1], [0], [0], [1], [0, 0, 1, 1], [], []>} : vector<16x32xf32>, vector<32x128xf32>, vector<16x128xf32> -> vector<16x128xf32>
    %7 = arith.addf %4, %6 : vector<16x128xf32>
    %c0_6 = arith.constant 0 : index
    %c0_7 = arith.constant 0 : index
    %8 = vector.load %arg5[%c0_6, %c0_7] : memref<16x128xf32, #tpu.memory_space<vmem>>, vector<16x128xf32>
    tpu.vector_store %arg5[%c0_6, %c0_7], %7 {strides = array<i32>} : memref<16x128xf32, #tpu.memory_space<vmem>>, vector<16x128xf32>,
    return
  }
  func.func @transform_0(%arg0: i32, %arg1: i32, %arg2: i32) -> (i32, i32) {
    %c0_i32 = arith.constant 0 : i32
    return %arg0, %arg2 : i32, i32
  }
  func.func @transform_1(%arg0: i32, %arg1: i32, %arg2: i32) -> (i32, i32) {
    %c0_i32 = arith.constant 0 : i32
    return %arg2, %arg1 : i32, i32
  }
  func.func @transform_2(%arg0: i32, %arg1: i32, %arg2: i32) -> (i32, i32) {
    %c0_i32 = arith.constant 0 : i32
    return %arg0, %arg1 : i32, i32
  }
}

</mosaic_0001>

<llo_original>
// kernel: forward.1
$region0: #{forward.1}
  #allocation0 [shape = 'u32[]', space=smem, size = 0x4, offset = 0x4, fixed_abs, tag = 'smem constant byte address 0x4 - core index']
  #allocation1 [shape = 'u32[144,128]{1,0:T(1,128)}', space=vmem, size = 0x12000, scoped, tag = 'internal scratch']
  %s0 = inlined_call_operand.hbm [shape: f32[16,32], index: 0, kind: input, shape index: {}]
  %s1 = inlined_call_operand.hbm [shape: f32[32,128], index: 1, kind: input, shape index: {}]
  %s2 = inlined_call_operand.vmem [shape: f32[16,128], index: 2, kind: output, shape index: {}]
  %s3 = sld [smem:[#allocation0]]
  $region30: #{forward.1} parent=0
    _
  %s5 = ssub.s32 1, %s3
  %s6 = scalar_select 0, %s5, %s3
  $region1: #{forward.1} parent=0
    #allocation2 [shape = 'u8[8192]{0}', space=vmem, size = 0x2000, scoped, tag = 'input window, operand 0, single buffered']
    #allocation3 [shape = 's32[1]{0}', space=sflag, size = 0x4, scoped, tag = 'scoped memory for forward.1']
    #allocation4 [shape = 'u8[16384]{0}', space=vmem, size = 0x4000, scoped, tag = 'input window, operand 1, single buffered']
    #allocation5 [shape = 's32[1]{0}', space=sflag, size = 0x4, scoped, tag = 'scoped memory for forward.1']
    %7 = vsyncpa [#allocation3], 0
    %8 = vsyncpa [#allocation5], 0
    // Predicated region
    $region2: #{forward.1} parent=1 // pred_check
      _
    $region3: #{forward.1} parent=1 // pred_check_branch
      %10 = sbr.rel (0) target = $region5
    $region4: #{forward.1} parent=1 // pred_region
      %s12 = ssub.s32 256, 256
      %13 = vsyncadd [#allocation3], %s12
      %s14 = sshll.u32 [#allocation2], 4
      %s15 = int_to_ptr.vmem [resolvable:$true] %s14
      %20 = dma.hbm_to_vmem [thread:$0]  %s0, 256, %s15, [#allocation3], 128, 128, 8
    $region5: #{forward.1} parent=1 // pred_fallthru
      _
    // Predicated region
    $region6: #{forward.1} parent=1 // pred_check
      _
    $region7: #{forward.1} parent=1 // pred_check_branch
      %22 = sbr.rel (0) target = $region9
    $region8: #{forward.1} parent=1 // pred_region
      %s24 = ssub.s32 512, 512
      %25 = vsyncadd [#allocation5], %s24
      %s26 = sshll.u32 [#allocation4], 4
      %s27 = int_to_ptr.vmem [resolvable:$true] %s26
      %32 = dma.hbm_to_vmem [thread:$0]  %s1, 512, %s27, [#allocation5], 128, 128, 8
    $region9: #{forward.1} parent=1 // pred_fallthru
      _
    // Predicated region
    $region10: #{forward.1} parent=1 // pred_check
      _
    $region11: #{forward.1} parent=1 // pred_check_branch
      %34 = sbr.rel (0) target = $region13
    $region12: #{forward.1} parent=1 // pred_region
      %35 = dma.done [#allocation3], 256
    $region13: #{forward.1} parent=1 // pred_fallthru
      _
    // Predicated region
    $region14: #{forward.1} parent=1 // pred_check
      _
    $region15: #{forward.1} parent=1 // pred_check_branch
      %37 = sbr.rel (0) target = $region17
    $region16: #{forward.1} parent=1 // pred_region
      %38 = dma.done [#allocation5], 512
    $region17: #{forward.1} parent=1 // pred_fallthru
      _
    %p39 = scmp.eq.s32.totalorder 0, 0
    // Predicated region
    $region18: #{forward.1} parent=1 // pred_check
      %p40 = pneg %p39
    $region19: #{forward.1} parent=1 // pred_check_branch
      %42 = sbr.rel (%p40) target = $region21
    $region20: #{forward.1} parent=1 // pred_region
      %43 = vst [vmem:[%s2] sm:$0xff] 0.0
      %44 = vst [vmem:[%s2 + $0x8] sm:$0xff] 0.0
    $region21: #{forward.1} parent=1 // pred_fallthru
      _
    %v45 = vld [vmem:[#allocation2] sm:$0xff]
    %v46 = vld [vmem:[#allocation2 + $0x8] sm:$0xff]
    %v47 = vld [vmem:[%s2] sm:$0xff]
    %v48 = vld [vmem:[%s2 + $0x8] sm:$0xff]
    %v49 = vld [vmem:[#allocation4] sm:$0xff]
    %v50 = vld [vmem:[#allocation4 + $0x8] sm:$0xff]
    %v51 = vld [vmem:[#allocation4 + $0x10] sm:$0xff]
    %v52 = vld [vmem:[#allocation4 + $0x18] sm:$0xff]
    %vm53 = vcmask 261120
    %v55 = vsel %vm53, %v45, 0
    %v58 = vsel %vm53, %v46, 0
    %60 = vmatprep.subr.mxu0 0.0
    %61 = vmatpush1.msra.mxu0 0.0
    %62 = vmatprep.subr.mxu0 0.0
    %63 = vmatpush1.msra.mxu0 0.0
    %64 = vmatprep.subr.mxu0 0.0
    %65 = vmatpush1.msra.mxu0 0.0
    %66 = vmatprep.subr.mxu0 0.0
    %67 = vmatpush1.msra.mxu0 0.0
    %68 = vmatprep.subr.mxu0 0.0
    %69 = vmatpush1.msra.mxu0 0.0
    %70 = vmatprep.subr.mxu0 0.0
    %71 = vmatpush1.msra.mxu0 0.0
    %72 = vmatprep.subr.mxu0 0.0
    %73 = vmatpush1.msra.mxu0 0.0
    %74 = vmatprep.subr.mxu0 0.0
    %75 = vmatpush1.msra.mxu0 0.0
    %76 = vmatprep.subr.mxu0 0.0
    %77 = vmatpush1.msra.mxu0 0.0
    %78 = vmatprep.subr.mxu0 0.0
    %79 = vmatpush1.msra.mxu0 0.0
    %80 = vmatprep.subr.mxu0 0.0
    %81 = vmatpush1.msra.mxu0 0.0
    %82 = vmatprep.subr.mxu0 0.0
    %83 = vmatpush1.msra.mxu0 0.0
    %84 = vmatprep.subr.mxu0 0.0
    %85 = vmatpush1.msra.mxu0 %v52
    %86 = vmatprep.subr.mxu0 0.0
    %87 = vmatpush1.msra.mxu0 %v51
    %88 = vmatprep.subr.mxu0 0.0
    %89 = vmatpush1.msra.mxu0 %v50
    %90 = vmatprep.subr.mxu0 0.0
    %91 = vmatpush1.msra.mxu0 %v49
    %92 = vmatprep.subr.mxu0 0.0
    %93 = vmatpush2.msra.mxu0 0.0
    %94 = vmatprep.subr.mxu0 0.0
    %95 = vmatpush2.msra.mxu0 0.0
    %96 = vmatprep.subr.mxu0 0.0
    %97 = vmatpush2.msra.mxu0 0.0
    %98 = vmatprep.subr.mxu0 0.0
    %99 = vmatpush2.msra.mxu0 0.0
    %100 = vmatprep.subr.mxu0 0.0
    %101 = vmatpush2.msra.mxu0 0.0
    %102 = vmatprep.subr.mxu0 0.0
    %103 = vmatpush2.msra.mxu0 0.0
    %104 = vmatprep.subr.mxu0 0.0
    %105 = vmatpush2.msra.mxu0 0.0
    %106 = vmatprep.subr.mxu0 0.0
    %107 = vmatpush2.msra.mxu0 0.0
    %108 = vmatprep.subr.mxu0 0.0
    %109 = vmatpush2.msra.mxu0 0.0
    %110 = vmatprep.subr.mxu0 0.0
    %111 = vmatpush2.msra.mxu0 0.0
    %112 = vmatprep.subr.mxu0 0.0
    %113 = vmatpush2.msra.mxu0 0.0
    %114 = vmatprep.subr.mxu0 0.0
    %115 = vmatpush2.msra.mxu0 0.0
    %116 = vmatprep.subr.mxu0 0.0
    %117 = vmatpush2.msra.mxu0 0.0
    %118 = vmatprep.subr.mxu0 0.0
    %119 = vmatpush2.msra.mxu0 0.0
    %120 = vmatprep.subr.mxu0 0.0
    %121 = vmatpush2.msra.mxu0 0.0
    %122 = vmatprep.subr.mxu0 0.0
    %123 = vmatpush2.msra.mxu0 0.0
    %124 = vmatprep.mubr.f32.mxu0 0.0
    %125 = vmatmul.mubr.f32.gmra.mxu0 %v55
    %v126 = vpop.f32.mrf.mxu0
    %v127 = vadd.f32 0.0, %v126
    %v128 = vpop.f32.mrf.mxu0
    %129 = vmatprep.mubr.f32.mxu0 0.0
    %130 = vmatmul.mubr.f32.gmra.mxu0 %v58
    %v131 = vpop.f32.mrf.mxu0
    %v132 = vadd.f32 0.0, %v131
    %v133 = vpop.f32.mrf.mxu0
    %134 = vdwg.mxu0
    %v135 = vadd.f32 %v47, %v127
    %v136 = vadd.f32 %v48, %v132
    %137 = vst [vmem:[%s2] sm:$0xff] %v135
    %138 = vst [vmem:[%s2 + $0x8] sm:$0xff] %v136
    // Predicated region
    $region22: #{forward.1} parent=1 // pred_check
      _
    $region23: #{forward.1} parent=1 // pred_check_branch
      %140 = sbr.rel (0) target = $region25
    $region24: #{forward.1} parent=1 // pred_region
      _
    $region25: #{forward.1} parent=1 // pred_fallthru
      _
    // Predicated region
    $region26: #{forward.1} parent=1 // pred_check
      _
    $region27: #{forward.1} parent=1 // pred_check_branch
      %142 = sbr.rel (0) target = $region29
    $region28: #{forward.1} parent=1 // pred_region
      _
    $region29: #{forward.1} parent=1 // pred_fallthru
      _
    %143 = vsyncpa [#allocation3], 1
    %144 = vsyncpa [#allocation5], 1

</llo_original>
